<compile_context>
chip_gen: v5e
topology: v5e:2x2
jax: 0.10.0
libtpu: 0.0.40
codegen_flags: <defaults>
</compile_context>

<pallas_src>
import jax
import jax.numpy as jnp
from jax.experimental import pallas as pl
from jax.experimental.pallas import tpu as pltpu

_LANE = 128
_SUBLANE = 8


def _round_up(n, m):
    return ((n + m - 1) // m) * m


def _cdiv(a, b):
    return (a + b - 1) // b


def critic_kernel(x_ref, w1_ref, b1_ref, w2t_ref, b2_ref, o_ref, acc_ref):
    """One (batch-tile, hidden-tile) grid step of relu(x@w1+b1) @ w2 + b2."""
    hi = pl.program_id(1)

    @pl.when(hi == 0)
    def _init():
        acc_ref[...] = jnp.zeros_like(acc_ref)

    # fc1 for this hidden chunk: (tb, S) @ (S, th) on the MXU, f32 accumulate.
    h = jnp.dot(x_ref[...], w1_ref[...], preferred_element_type=jnp.float32)
    h = jnp.maximum(h + b1_ref[...], 0.0)

    # fc2 partial products (N=1): multiply by the matching w2 row chunk and
    # fold the th lanes down to a single 128-lane accumulator with VPU adds;
    # the expensive cross-lane reduce happens exactly once, in the finalize.
    hw = h * w2t_ref[...]
    th = hw.shape[-1]
    partial = hw[:, 0:_LANE]
    for c in range(1, th // _LANE):
        partial = partial + hw[:, c * _LANE:(c + 1) * _LANE]
    acc_ref[...] += partial

    @pl.when(hi == pl.num_programs(1) - 1)
    def _finalize():
        v = jnp.sum(acc_ref[...], axis=-1) + b2_ref[0]      # single XLU reduce
        o_ref[...] = v[None, :].astype(o_ref.dtype)         # lane-dense (1, tb)


def prepare_critic_params(w1, b1, w2, b2):
    """Pad / lay out the weights once, outside the hot forward path."""
    S, H = w1.shape
    Hp = _round_up(H, _LANE)
    b1 = b1.reshape(1, H)
    if Hp != H:
        w1 = jnp.pad(w1, ((0, 0), (0, Hp - H)))
        b1 = jnp.pad(b1, ((0, 0), (0, Hp - H)))
        w2 = jnp.pad(w2, ((0, Hp - H), (0, 0)))
    w2t = w2.reshape(1, Hp)         # row layout for the in-kernel VPU multiply
    return w1, b1, w2t, b2.reshape(1)


def _plan_tiles(B, S, Hp, block_b, vmem_budget):
    """Pick a batch tile tb and hidden tile th (th | Hp) that fit the budget."""
    n_chunks = Hp // _LANE
    w1_bytes = S * Hp * 4
    if w1_bytes <= vmem_budget // 2:
        th, resident = Hp, True                 # whole w1 stays VMEM-resident
        w_bytes = w1_bytes                      # single buffer (pl.Buffered(1))
    else:
        # Stream double-buffered H chunks; th must divide Hp exactly (and be a
        # multiple of 128) so no weight chunk ever reads out of bounds.
        cap = max(_LANE, ((vmem_budget // 2) // (2 * S * 4)) // _LANE * _LANE)
        th = _LANE
        for d in range(1, n_chunks + 1):
            cand = d * _LANE
            if n_chunks % d == 0 and cand <= cap:
                th = cand
        resident = False
        w_bytes = 2 * S * th * 4
    # Batch tile: big tiles amortize the ~0.35us/step overhead, but split so
    # the "parallel" axis has >= 2 tiles whenever B allows (v7x megacore).
    tb = max(_SUBLANE, min(block_b, _round_up(_cdiv(B, 2), _SUBLANE)))
    per_row = (2 * S + th + _LANE + 2) * 4      # 2x x, fc1 out, acc, out slab
    max_tb = max(_SUBLANE,
                 ((vmem_budget - w_bytes) // per_row) // _SUBLANE * _SUBLANE)
    return min(tb, max_tb), th, resident


def critic_forward(x, w1p, b1p, w2t, b2, *, block_b=512,
                   vmem_budget=40 * 1024 * 1024):
    """value = relu(x @ w1 + b1) @ w2 + b2 -> (B, 1). Params pre-prepared."""
    B, S = x.shape
    Hp = w1p.shape[1]

    tb, th, resident = _plan_tiles(B, S, Hp, block_b, vmem_budget)
    grid_b = _cdiv(B, tb)        # no wrapper pad: tail rows are garbage, sliced
    grid_h = Hp // th            # th divides Hp by construction

    def _weight_spec(shape, imap):
        if resident:             # constant block index -> no second VMEM buffer
            return pl.BlockSpec(shape, imap, pipeline_mode=pl.Buffered(1))
        return pl.BlockSpec(shape, imap)

    out = pl.pallas_call(
        critic_kernel,
        out_shape=jax.ShapeDtypeStruct((grid_b, tb), x.dtype),
        grid_spec=pltpu.PrefetchScalarGridSpec(
            num_scalar_prefetch=0,
            grid=(grid_b, grid_h),
            in_specs=[
                pl.BlockSpec((tb, S), lambda i, h: (i, 0)),      # x: streamed
                _weight_spec((S, th), lambda i, h: (0, h)),      # w1
                _weight_spec((1, th), lambda i, h: (0, h)),      # b1
                _weight_spec((1, th), lambda i, h: (0, h)),      # w2 row
                pl.BlockSpec(memory_space=pltpu.MemorySpace.SMEM),  # b2 scalar
            ],
            out_specs=pl.BlockSpec((1, tb), lambda i, h: (i, 0)),
            scratch_shapes=[pltpu.VMEM((tb, _LANE), jnp.float32)],
        ),
        compiler_params=pltpu.CompilerParams(
            dimension_semantics=("parallel", "arbitrary"),
            vmem_limit_bytes=min(vmem_budget + (8 << 20), 48 << 20),
        ),
        cost_estimate=pl.CostEstimate(
            flops=2 * B * S * Hp + 2 * B * Hp,
            transcendentals=0,
            bytes_accessed=4 * (B * S + S * Hp + 2 * Hp + B + 1),
        ),
    )(x, w1p, b1p, w2t, b2)

    # Layout plumbing only: (grid_b, tb) lane-dense slab -> (B, 1).
    return out.reshape(grid_b * tb)[:B].reshape(B, 1)


def init_params(key, state_size, hidden_size):
    # PyTorch nn.Linear default init: U(-1/sqrt(fan_in), 1/sqrt(fan_in)).
    k1, k2, k3, k4 = jax.random.split(key, 4)
    bound1 = 1.0 / jnp.sqrt(jnp.float32(state_size))
    bound2 = 1.0 / jnp.sqrt(jnp.float32(hidden_size))
    w1 = jax.random.uniform(k1, (state_size, hidden_size), jnp.float32,
                            -bound1, bound1)
    b1 = jax.random.uniform(k2, (hidden_size,), jnp.float32, -bound1, bound1)
    w2 = jax.random.uniform(k3, (hidden_size, 1), jnp.float32, -bound2, bound2)
    b2 = jax.random.uniform(k4, (1,), jnp.float32, -bound2, bound2)
    return w1, b1, w2, b2


if __name__ == "__main__":
    batch = 2
    state_size = 4
    hidden_size = 64

    key = jax.random.PRNGKey(0)
    k_x, k_p = jax.random.split(key)
    state = jax.random.normal(k_x, (batch, state_size), jnp.float32)
    w1, b1, w2, b2 = init_params(k_p, state_size, hidden_size)

    # Pad / lay out the weights once (hoisted out of the per-call path).
    params = prepare_critic_params(w1, b1, w2, b2)

    fwd = jax.jit(critic_forward)
    value = jax.block_until_ready(fwd(state, *params))

    # Pure-JAX reference for the forward pass.
    ref = jnp.maximum(state @ w1 + b1, 0.0) @ w2 + b2
    assert value.shape == (batch, 1)
    assert jnp.allclose(value, ref, atol=1e-5, rtol=1e-5), (value, ref)

    print("KERNEL_OK")
</pallas_src>

<mosaic_0001>
module attributes {stable_mosaic.version = 11 : i64} {
  func.func @critic_kernel(%arg0: i32, %arg1: i32, %arg2: memref<8x4xf32, #tpu.memory_space<vmem>>, %arg3: memref<4x128xf32, #tpu.memory_space<vmem>>, %arg4: memref<1x128xf32, #tpu.memory_space<vmem>>, %arg5: memref<1x128xf32, #tpu.memory_space<vmem>>, %arg6: memref<1xf32, #tpu.memory_space<smem>>, %arg7: memref<1x8xf32, #tpu.memory_space<vmem>>, %arg8: memref<8x128xf32, #tpu.memory_space<vmem>>) attributes {dimension_semantics = [#tpu.dimension_semantics<parallel>, #tpu.dimension_semantics<arbitrary>], iteration_bounds = array<i64: 1, 1>, scalar_prefetch = 0 : i64, scratch_operands = 1 : i64, tpu.core_type = #tpu.core_type<tc>, window_params = [{transform_indices = @transform_0, window_bounds = array<i64: 8, 4>}, {pipeline_mode = #tpu.pipeline_mode<synchronous>, transform_indices = @transform_1, window_bounds = array<i64: 4, 128>}, {pipeline_mode = #tpu.pipeline_mode<synchronous>, transform_indices = @transform_2, window_bounds = array<i64: 1, 128>}, {pipeline_mode = #tpu.pipeline_mode<synchronous>, transform_indices = @transform_3, window_bounds = array<i64: 1, 128>}, {transform_indices = @transform_4, window_bounds = array<i64: 1>}, {transform_indices = @transform_5, window_bounds = array<i64: 1, 8>}]} {
    %c0_i32 = arith.constant 0 : i32
    %0 = arith.cmpi eq, %arg1, %c0_i32 : i32
    %1 = arith.extui %0 : i1 to i32
    %c0_i32_0 = arith.constant 0 : i32
    %2 = arith.cmpi ne, %1, %c0_i32_0 : i32
    scf.if %2 {
      %cst_15 = arith.constant 0.000000e+00 : f32
      %20 = vector.broadcast %cst_15 : f32 to vector<8x128xf32>
      %c0_16 = arith.constant 0 : index
      %c0_17 = arith.constant 0 : index
      %21 = vector.load %arg8[%c0_16, %c0_17] : memref<8x128xf32, #tpu.memory_space<vmem>>, vector<8x128xf32>
      tpu.vector_store %arg8[%c0_16, %c0_17], %20 {strides = array<i32>} : memref<8x128xf32, #tpu.memory_space<vmem>>, vector<8x128xf32>,
    } else {
    }
    %c0 = arith.constant 0 : index
    %c0_1 = arith.constant 0 : index
    %3 = vector.load %arg2[%c0, %c0_1] : memref<8x4xf32, #tpu.memory_space<vmem>>, vector<8x4xf32>
    %c0_2 = arith.constant 0 : index
    %c0_3 = arith.constant 0 : index
    %4 = vector.load %arg3[%c0_2, %c0_3] : memref<4x128xf32, #tpu.memory_space<vmem>>, vector<4x128xf32>
    %cst = arith.constant dense<0.000000e+00> : vector<8x128xf32>
    %5 = tpu.matmul %3, %4, %cst {dimension_numbers = #tpu.dot_dimension_numbers<[1], [0], [0], [1], [0, 0, 1, 1], [], []>} : vector<8x4xf32>, vector<4x128xf32>, vector<8x128xf32> -> vector<8x128xf32>
    %c0_4 = arith.constant 0 : index
    %c0_5 = arith.constant 0 : index
    %6 = vector.load %arg4[%c0_4, %c0_5] : memref<1x128xf32, #tpu.memory_space<vmem>>, vector<1x128xf32>
    %7 = vector.broadcast %6 : vector<1x128xf32> to vector<8x128xf32>
    %8 = arith.addf %5, %7 : vector<8x128xf32>
    %cst_6 = arith.constant 0.000000e+00 : f32
    %9 = vector.broadcast %cst_6 : f32 to vector<8x128xf32>
    %10 = arith.maximumf %8, %9 : vector<8x128xf32>
    %c0_7 = arith.constant 0 : index
    %c0_8 = arith.constant 0 : index
    %11 = vector.load %arg5[%c0_7, %c0_8] : memref<1x128xf32, #tpu.memory_space<vmem>>, vector<1x128xf32>
    %12 = vector.broadcast %11 : vector<1x128xf32> to vector<8x128xf32>
    %13 = arith.mulf %10, %12 : vector<8x128xf32>
    %c0_9 = arith.constant 0 : index
    %c0_10 = arith.constant 0 : index
    %14 = vector.load %arg8[%c0_9, %c0_10] : memref<8x128xf32, #tpu.memory_space<vmem>>, vector<8x128xf32>
    %15 = arith.addf %14, %13 : vector<8x128xf32>
    %c0_11 = arith.constant 0 : index
    %c0_12 = arith.constant 0 : index
    %16 = vector.load %arg8[%c0_11, %c0_12] : memref<8x128xf32, #tpu.memory_space<vmem>>, vector<8x128xf32>
    tpu.vector_store %arg8[%c0_11, %c0_12], %15 {strides = array<i32>} : memref<8x128xf32, #tpu.memory_space<vmem>>, vector<8x128xf32>,
    %c0_i32_13 = arith.constant 0 : i32
    %17 = arith.cmpi eq, %arg1, %c0_i32_13 : i32
    %18 = arith.extui %17 : i1 to i32
    %c0_i32_14 = arith.constant 0 : i32
    %19 = arith.cmpi ne, %18, %c0_i32_14 : i32
    scf.if %19 {
      %c0_15 = arith.constant 0 : index
      %c0_16 = arith.constant 0 : index
      %20 = vector.load %arg8[%c0_15, %c0_16] : memref<8x128xf32, #tpu.memory_space<vmem>>, vector<8x128xf32>
      %cst_17 = arith.constant dense<0.000000e+00> : vector<8xf32>
      %21 = vector.multi_reduction <add>, %20, %cst_17 [1] : vector<8x128xf32> to vector<8xf32>
      %c0_18 = arith.constant 0 : index
      %22 = memref.load %arg6[%c0_18] : memref<1xf32, #tpu.memory_space<smem>>
      %23 = vector.broadcast %22 : f32 to vector<8xf32>
      %24 = arith.addf %21, %23 : vector<8xf32>
      %25 = vector.shape_cast %24 : vector<8xf32> to vector<1x8xf32>
      %c0_19 = arith.constant 0 : index
      %c0_20 = arith.constant 0 : index
      %26 = vector.load %arg7[%c0_19, %c0_20] : memref<1x8xf32, #tpu.memory_space<vmem>>, vector<1x8xf32>
      tpu.vector_store %arg7[%c0_19, %c0_20], %25 {strides = array<i32>} : memref<1x8xf32, #tpu.memory_space<vmem>>, vector<1x8xf32>,
    } else {
    }
    return
  }
  func.func @transform_0(%arg0: i32, %arg1: i32) -> (i32, i32) {
    %c0_i32 = arith.constant 0 : i32
    %c0_i32_0 = arith.constant 0 : i32
    return %arg0, %c0_i32 : i32, i32
  }
  func.func @transform_1(%arg0: i32, %arg1: i32) -> (i32, i32) {
    %c0_i32 = arith.constant 0 : i32
    %c0_i32_0 = arith.constant 0 : i32
    return %c0_i32, %arg1 : i32, i32
  }
  func.func @transform_2(%arg0: i32, %arg1: i32) -> (i32, i32) {
    %c0_i32 = arith.constant 0 : i32
    %c0_i32_0 = arith.constant 0 : i32
    return %c0_i32, %arg1 : i32, i32
  }
  func.func @transform_3(%arg0: i32, %arg1: i32) -> (i32, i32) {
    %c0_i32 = arith.constant 0 : i32
    %c0_i32_0 = arith.constant 0 : i32
    return %c0_i32, %arg1 : i32, i32
  }
  func.func @transform_4(%arg0: i32, %arg1: i32) -> i32 {
    %c0_i32 = arith.constant 0 : i32
    %c0_i32_0 = arith.constant 0 : i32
    return %c0_i32 : i32
  }
  func.func @transform_5(%arg0: i32, %arg1: i32) -> (i32, i32) {
    %c0_i32 = arith.constant 0 : i32
    %c0_i32_0 = arith.constant 0 : i32
    return %arg0, %c0_i32 : i32, i32
  }
}

</mosaic_0001>

<llo_original>
// kernel: critic_forward.1
$region0: #{critic_forward.1}
  #allocation0 [shape = 'u32[]', space=smem, size = 0x4, offset = 0x4, fixed_abs, tag = 'smem constant byte address 0x4 - core index']
  #allocation1 [shape = 'u32[72,128]{1,0:T(1,128)}', space=vmem, size = 0x9000, scoped, tag = 'internal scratch']
  #allocation2 [shape = 'f32[8,128]{1,0:T(8,128)}', space=vmem, size = 0x1000, scoped, tag = 'scratch operand']
  #allocation3 [shape = 'f32[1]{0:T(128)S(6)}', space=smem, size = 0x200, scoped, tag = 'scoped memory for critic_forward.1']
  %s0 = inlined_call_operand.vmem [shape: f32[2,4], index: 0, kind: input, shape index: {}]
  %s1 = inlined_call_operand.hbm [shape: f32[4,128], index: 1, kind: input, shape index: {}]
  %s2 = inlined_call_operand.vmem [shape: f32[1,128], index: 2, kind: input, shape index: {}]
  %s3 = inlined_call_operand.vmem [shape: f32[1,128], index: 3, kind: input, shape index: {}]
  %s4 = inlined_call_operand.<no memory space> [shape: f32[1], index: 4, kind: input, shape index: {}]
  %s5 = inlined_call_operand.vmem [shape: f32[1,8], index: 5, kind: output, shape index: {}]
  %s6 = sld [smem:[#allocation0]]
  $region42: #{critic_forward.1} parent=0
    _
  %s8 = ssub.s32 1, %s6
  %s9 = scalar_select 0, %s8, %s6
  %10 = sst [smem:[#allocation3]] %s4
  $region1: #{critic_forward.1} parent=0
    #allocation4 [shape = 'u8[2048]{0}', space=vmem, size = 0x800, scoped, tag = 'input window, operand 1, single buffered']
    #allocation5 [shape = 's32[1]{0}', space=sflag, size = 0x4, scoped, tag = 'scoped memory for critic_forward.1']
    %11 = vsyncpa [#allocation5], 0
    // Predicated region
    $region2: #{critic_forward.1} parent=1 // pred_check
      _
    $region3: #{critic_forward.1} parent=1 // pred_check_branch
      %13 = sbr.rel (0) target = $region5
    $region4: #{critic_forward.1} parent=1 // pred_region
      _
    $region5: #{critic_forward.1} parent=1 // pred_fallthru
      _
    // Predicated region
    $region6: #{critic_forward.1} parent=1 // pred_check
      _
    $region7: #{critic_forward.1} parent=1 // pred_check_branch
      %15 = sbr.rel (0) target = $region9
    $region8: #{critic_forward.1} parent=1 // pred_region
      %17 = vsyncadd [#allocation5], 0
      %s19 = sshll.u32 %s1, 4
      %s20 = int_to_ptr.hbm [resolvable:$true] %s19
      %s21 = sshll.u32 [#allocation4], 4
      %s22 = int_to_ptr.vmem [resolvable:$true] %s21
      %24 = dma.hbm_to_vmem [thread:$0]  %s20, 64, %s22, [#allocation5]
    $region9: #{critic_forward.1} parent=1 // pred_fallthru
      _
    // Predicated region
    $region10: #{critic_forward.1} parent=1 // pred_check
      _
    $region11: #{critic_forward.1} parent=1 // pred_check_branch
      %26 = sbr.rel (0) target = $region13
    $region12: #{critic_forward.1} parent=1 // pred_region
      _
    $region13: #{critic_forward.1} parent=1 // pred_fallthru
      _
    // Predicated region
    $region14: #{critic_forward.1} parent=1 // pred_check
      _
    $region15: #{critic_forward.1} parent=1 // pred_check_branch
      %28 = sbr.rel (0) target = $region17
    $region16: #{critic_forward.1} parent=1 // pred_region
      _
    $region17: #{critic_forward.1} parent=1 // pred_fallthru
      _
    // Predicated region
    $region18: #{critic_forward.1} parent=1 // pred_check
      _
    $region19: #{critic_forward.1} parent=1 // pred_check_branch
      %30 = sbr.rel (0) target = $region21
    $region20: #{critic_forward.1} parent=1 // pred_region
      _
    $region21: #{critic_forward.1} parent=1 // pred_fallthru
      _
    // Predicated region
    $region22: #{critic_forward.1} parent=1 // pred_check
      _
    $region23: #{critic_forward.1} parent=1 // pred_check_branch
      %32 = sbr.rel (0) target = $region25
    $region24: #{critic_forward.1} parent=1 // pred_region
      %34 = dma.done [#allocation5], 64
    $region25: #{critic_forward.1} parent=1 // pred_fallthru
      _
    %p35 = scmp.eq.s32.totalorder 0, 0
    // Predicated region
    $region26: #{critic_forward.1} parent=1 // pred_check
      %p36 = pneg %p35
    $region27: #{critic_forward.1} parent=1 // pred_check_branch
      %38 = sbr.rel (%p36) target = $region29
    $region28: #{critic_forward.1} parent=1 // pred_region
      %39 = vst [vmem:[#allocation2] sm:$0xff] 0.0
    $region29: #{critic_forward.1} parent=1 // pred_fallthru
      _
    %v40 = vld [vmem:[%s0] sm:$0xff]
    %v41 = vld [vmem:[#allocation4] sm:$0xf]
    %v42 = vld [vmem:[%s2] sm:$0x1]
    %v44 = vperm.slane %v42, 0
    %vm46 = vcmask 31744
    %v48 = vsel %vm46, %v40, 0
    %vm50 = vcmask 1043456
    %v52 = vsel %vm50, %v41, 0
    %54 = vmatpush.msra.mxu0 0.0
    %55 = vmatpush.msra.mxu0 0.0
    %56 = vmatpush.msra.mxu0 0.0
    %57 = vmatpush.msra.mxu0 0.0
    %58 = vmatpush.msra.mxu0 0.0
    %59 = vmatpush.msra.mxu0 0.0
    %60 = vmatpush.msra.mxu0 0.0
    %61 = vmatpush.msra.mxu0 0.0
    %62 = vmatpush.msra.mxu0 0.0
    %63 = vmatpush.msra.mxu0 0.0
    %64 = vmatpush.msra.mxu0 0.0
    %65 = vmatpush.msra.mxu0 0.0
    %66 = vmatpush.msra.mxu0 0.0
    %67 = vmatpush.msra.mxu0 0.0
    %68 = vmatpush.msra.mxu0 0.0
    %69 = vmatpush.msra.mxu0 %v52
    %70 = vmatmul.f32.gmra.mxu0 %v48
    %v71 = vpop.f32.mrf.mxu0
    %v72 = vadd.f32 %v44, %v71
    %73 = vdwg.mxu0
    %v74 = vmax.f32 %v72, 0.0
    %v75 = vld [vmem:[%s3] sm:$0x1]
    %v77 = vperm.slane %v75, 0
    %v79 = vmul.f32 %v74, %v77
    %v80 = vld [vmem:[#allocation2] sm:$0xff]
    %v81 = vadd.f32 %v80, %v79
    %82 = vst [vmem:[#allocation2] sm:$0xff] %v81
    // Predicated region
    $region30: #{critic_forward.1} parent=1 // pred_check
      %p83 = pneg %p35
    $region31: #{critic_forward.1} parent=1 // pred_check_branch
      %85 = sbr.rel (%p83) target = $region33
    $region32: #{critic_forward.1} parent=1 // pred_region
      %v86 = vld [vmem:[#allocation2] sm:$0xff]
      %87 = vadd.xlane.f32.xlu0 %v86
      %v88 = vpop.xlane.xlu0 %87
      %s89 = sld [smem:[#allocation3]]
      %v90 = vstv %s89
      %v91 = vadd.f32 %v88, %v90
      %v93 = vlaneseq
      %v94 = vand.u32 %v93, 127
      %v95 = vperm.slane %v91, %v94
      %vm97 = vcmask 57344
      %98 = vst.msk [vmem:[%s5] sm:$0x1] %vm97, %v95
    $region33: #{critic_forward.1} parent=1 // pred_fallthru
      _
    // Predicated region
    $region34: #{critic_forward.1} parent=1 // pred_check
      _
    $region35: #{critic_forward.1} parent=1 // pred_check_branch
      %100 = sbr.rel (0) target = $region37
    $region36: #{critic_forward.1} parent=1 // pred_region
      _
    $region37: #{critic_forward.1} parent=1 // pred_fallthru
      _
    // Predicated region
    $region38: #{critic_forward.1} parent=1 // pred_check
      _
    $region39: #{critic_forward.1} parent=1 // pred_check_branch
      %102 = sbr.rel (0) target = $region41
    $region40: #{critic_forward.1} parent=1 // pred_region
      _
    $region41: #{critic_forward.1} parent=1 // pred_fallthru
      _
    %103 = vsyncpa [#allocation5], 1

</llo_original>
